<compile_context>
chip_gen: v7x
topology: tpu7x:2x2x1
jax: 0.10.0
libtpu: 0.0.40
codegen_flags: <defaults>
</compile_context>

<pallas_src>
import functools

import jax
import jax.numpy as jnp
from jax.experimental import pallas as pl
from jax.experimental.pallas import tpu as pltpu


def swiglu_kernel(x_ref, w1_ref, b1_ref, w3_ref, b3_ref, w2_ref, b2_ref,
                  o_ref, acc_ref):
    """Grid = (rows i, d_ffn tile j).  Accumulates the down-projection over j."""
    j = pl.program_id(1)

    @pl.when(j == 0)
    def _init():
        # Fuse the output bias b2 into the accumulator init.
        acc_ref[...] = jnp.broadcast_to(
            b2_ref[...].astype(jnp.float32), acc_ref.shape)

    x = x_ref[...]                                           # [tm, d_model] bf16

    # Up projections for this d_ffn slab (bf16 MXU, f32 accumulate).
    h1 = jnp.dot(x, w1_ref[...], preferred_element_type=jnp.float32) + b1_ref[...]
    h3 = jnp.dot(x, w3_ref[...], preferred_element_type=jnp.float32) + b3_ref[...]

    # SwiGLU gate in f32 (sigmoid goes to the EUP slot).
    h = (h1 * jax.nn.sigmoid(h1)) * h3                       # [tm, tf] f32

    # Partial down projection for this slab, accumulated in f32 VMEM scratch.
    acc_ref[...] += jnp.dot(h.astype(w2_ref.dtype), w2_ref[...],
                            preferred_element_type=jnp.float32)

    @pl.when(j == pl.num_programs(1) - 1)
    def _finalize():
        # TODO(synk): dropout omitted (identity in eval mode).
        o_ref[...] = acc_ref[...].astype(o_ref.dtype)


def _vmem_estimate(tile_m, tile_f, d_model, compute_bytes, out_bytes):
    """Rough double-buffered VMEM footprint for the chosen tiles."""
    buf = 0
    buf += 2 * tile_m * d_model * compute_bytes          # x (2 bufs)
    buf += 2 * 2 * d_model * tile_f * compute_bytes      # w1, w3 (2 bufs each)
    buf += 2 * tile_f * d_model * compute_bytes          # w2 (2 bufs)
    buf += 2 * 2 * tile_f * 4 + 2 * d_model * 4          # b1, b3, b2
    buf += 2 * tile_m * d_model * out_bytes              # output (2 bufs)
    buf += tile_m * d_model * 4                          # f32 accumulator
    return buf


def swiglu_expert(x, w1, b1, w3, b3, w2, b2, *,
                  tile_m=128, tile_f=128, compute_dtype=jnp.bfloat16):
    """x: [B, T, d_model]; weights pre-transposed to [in, out]; biases [1, out]."""
    B, T, d_model = x.shape
    d_ffn = w1.shape[1]
    M = B * T
    out_dtype = x.dtype

    # d_ffn tiling: fall back to a single slab if not divisible.
    tile_f = min(tile_f, d_ffn)
    if d_ffn % tile_f != 0:
        tile_f = d_ffn

    # Pad M up to a multiple of tile_m (padded rows are discarded afterwards).
    m_pad = (-M) % tile_m
    x2d = x.reshape(M, d_model)
    if m_pad:
        x2d = jnp.pad(x2d, ((0, m_pad), (0, 0)))
    Mp = M + m_pad

    # bf16 MXU path: cast activations and weights; biases stay f32 (added after
    # the f32 accumulate), keeping the elementwise SwiGLU math in f32.
    xc = x2d.astype(compute_dtype)
    w1c = w1.astype(compute_dtype)
    w3c = w3.astype(compute_dtype)
    w2c = w2.astype(compute_dtype)
    b1f = b1.astype(jnp.float32)
    b3f = b3.astype(jnp.float32)
    b2f = b2.astype(jnp.float32)

    grid = (Mp // tile_m, d_ffn // tile_f)

    cost = pl.CostEstimate(
        flops=6 * M * d_model * d_ffn + 4 * M * d_ffn,
        transcendentals=M * d_ffn,
        bytes_accessed=(xc.size * xc.dtype.itemsize
                        + w1c.size * w1c.dtype.itemsize
                        + w3c.size * w3c.dtype.itemsize
                        + w2c.size * w2c.dtype.itemsize
                        + (b1f.size + b3f.size + b2f.size) * 4
                        + M * d_model * jnp.dtype(out_dtype).itemsize),
    )

    compute_bytes = jnp.dtype(compute_dtype).itemsize
    out_bytes = jnp.dtype(out_dtype).itemsize
    vmem_limit = min(
        max(int(1.5 * _vmem_estimate(tile_m, tile_f, d_model,
                                     compute_bytes, out_bytes)) + (2 << 20),
            32 << 20),
        64 << 20)  # v7x-safe cap (64 MiB VMEM per TensorCore)

    out2d = pl.pallas_call(
        swiglu_kernel,
        out_shape=jax.ShapeDtypeStruct((Mp, d_model), out_dtype),
        grid_spec=pltpu.PrefetchScalarGridSpec(
            num_scalar_prefetch=0,
            grid=grid,
            in_specs=[
                pl.BlockSpec((tile_m, d_model), lambda i, j: (i, 0)),   # x rows
                pl.BlockSpec((d_model, tile_f), lambda i, j: (0, j)),   # W1^T slab
                pl.BlockSpec((1, tile_f),       lambda i, j: (0, j)),   # b1 slab
                pl.BlockSpec((d_model, tile_f), lambda i, j: (0, j)),   # W3^T slab
                pl.BlockSpec((1, tile_f),       lambda i, j: (0, j)),   # b3 slab
                pl.BlockSpec((tile_f, d_model), lambda i, j: (j, 0)),   # W2^T slab
                pl.BlockSpec((1, d_model),      lambda i, j: (0, 0)),   # b2
            ],
            out_specs=pl.BlockSpec((tile_m, d_model), lambda i, j: (i, 0)),
            scratch_shapes=[pltpu.VMEM((tile_m, d_model), jnp.float32)],
        ),
        compiler_params=pltpu.CompilerParams(
            dimension_semantics=("parallel", "arbitrary"),
            vmem_limit_bytes=vmem_limit,
        ),
        cost_estimate=cost,
    )(xc, w1c, b1f, w3c, b3f, w2c, b2f)

    if m_pad:
        out2d = out2d[:M]
    return out2d.reshape(B, T, d_model)


def reference_swiglu(x, w1, b1, w3, b3, w2, b2):
    """Pure-JAX f32 reference (same math, no Pallas, no bf16)."""
    h1 = x @ w1 + b1[0]
    h3 = x @ w3 + b3[0]
    h = jax.nn.silu(h1) * h3
    return h @ w2 + b2[0]


if __name__ == "__main__":
    # Small but lane-/MXU-aligned config: [B, T, d_model], d_model & d_ffn
    # multiples of 128 so stores are lane-dense and tiles are MXU-friendly.
    B, T, d_model, d_ffn = 2, 128, 128, 256

    key = jax.random.PRNGKey(0)
    kx, k1, kb1, k3, kb3, k2, kb2 = jax.random.split(key, 7)

    x = jax.random.normal(kx, (B, T, d_model), dtype=jnp.float32)

    # nn.Linear(d_model, d_ffn).weight is [d_ffn, d_model]; we store the
    # transpose [d_model, d_ffn] so the kernel computes x @ W directly.
    scale1 = 1.0 / (d_model ** 0.5)
    scale2 = 1.0 / (d_ffn ** 0.5)
    w1 = jax.random.uniform(k1, (d_model, d_ffn), jnp.float32, -scale1, scale1)
    b1 = jax.random.uniform(kb1, (1, d_ffn), jnp.float32, -scale1, scale1)
    w3 = jax.random.uniform(k3, (d_model, d_ffn), jnp.float32, -scale1, scale1)
    b3 = jax.random.uniform(kb3, (1, d_ffn), jnp.float32, -scale1, scale1)
    w2 = jax.random.uniform(k2, (d_ffn, d_model), jnp.float32, -scale2, scale2)
    b2 = jax.random.uniform(kb2, (1, d_model), jnp.float32, -scale2, scale2)

    out = swiglu_expert(x, w1, b1, w3, b3, w2, b2, tile_m=128, tile_f=128)
    out = jax.block_until_ready(out)

    ref = reference_swiglu(x, w1, b1, w3, b3, w2, b2)
    assert out.shape == (B, T, d_model)
    # Loose tolerance: the kernel uses bf16 matmuls (f32 accumulate) per the
    # autocast in the reference module, the pure-JAX reference is full f32.
    assert jnp.allclose(out, ref, atol=5e-2, rtol=5e-2), (
        "mismatch vs JAX reference; max abs diff = "
        f"{float(jnp.max(jnp.abs(out - ref)))}")

    print("KERNEL_OK")
</pallas_src>

<mosaic_0001>
module attributes {stable_mosaic.version = 11 : i64} {
  func.func @swiglu_kernel(%arg0: i32, %arg1: i32, %arg2: memref<128x128xbf16, #tpu.memory_space<vmem>>, %arg3: memref<128x128xbf16, #tpu.memory_space<vmem>>, %arg4: memref<1x128xf32, #tpu.memory_space<vmem>>, %arg5: memref<128x128xbf16, #tpu.memory_space<vmem>>, %arg6: memref<1x128xf32, #tpu.memory_space<vmem>>, %arg7: memref<128x128xbf16, #tpu.memory_space<vmem>>, %arg8: memref<1x128xf32, #tpu.memory_space<vmem>>, %arg9: memref<128x128xf32, #tpu.memory_space<vmem>>, %arg10: memref<128x128xf32, #tpu.memory_space<vmem>>) attributes {dimension_semantics = [#tpu.dimension_semantics<parallel>, #tpu.dimension_semantics<arbitrary>], iteration_bounds = array<i64: 2, 2>, scalar_prefetch = 0 : i64, scratch_operands = 1 : i64, tpu.core_type = #tpu.core_type<tc>, window_params = [{transform_indices = @transform_0, window_bounds = array<i64: 128, 128>}, {transform_indices = @transform_1, window_bounds = array<i64: 128, 128>}, {transform_indices = @transform_2, window_bounds = array<i64: 1, 128>}, {transform_indices = @transform_3, window_bounds = array<i64: 128, 128>}, {transform_indices = @transform_4, window_bounds = array<i64: 1, 128>}, {transform_indices = @transform_5, window_bounds = array<i64: 128, 128>}, {pipeline_mode = #tpu.pipeline_mode<synchronous>, transform_indices = @transform_6, window_bounds = array<i64: 1, 128>}, {transform_indices = @transform_7, window_bounds = array<i64: 128, 128>}]} {
    %c0_i32 = arith.constant 0 : i32
    %0 = arith.cmpi eq, %arg1, %c0_i32 : i32
    %1 = arith.extui %0 : i1 to i32
    %c0_i32_0 = arith.constant 0 : i32
    %2 = arith.cmpi ne, %1, %c0_i32_0 : i32
    scf.if %2 {
      %c0_20 = arith.constant 0 : index
      %c0_21 = arith.constant 0 : index
      %30 = vector.load %arg8[%c0_20, %c0_21] : memref<1x128xf32, #tpu.memory_space<vmem>>, vector<1x128xf32>
      %31 = vector.shape_cast %30 : vector<1x128xf32> to vector<1x128xf32>
      %32 = vector.broadcast %31 : vector<1x128xf32> to vector<128x128xf32>
      %c0_22 = arith.constant 0 : index
      %c0_23 = arith.constant 0 : index
      %33 = vector.load %arg10[%c0_22, %c0_23] : memref<128x128xf32, #tpu.memory_space<vmem>>, vector<128x128xf32>
      tpu.vector_store %arg10[%c0_22, %c0_23], %32 {strides = array<i32>} : memref<128x128xf32, #tpu.memory_space<vmem>>, vector<128x128xf32>,
    } else {
    }
    %c0 = arith.constant 0 : index
    %c0_1 = arith.constant 0 : index
    %3 = vector.load %arg2[%c0, %c0_1] : memref<128x128xbf16, #tpu.memory_space<vmem>>, vector<128x128xbf16>
    %c0_2 = arith.constant 0 : index
    %c0_3 = arith.constant 0 : index
    %4 = vector.load %arg3[%c0_2, %c0_3] : memref<128x128xbf16, #tpu.memory_space<vmem>>, vector<128x128xbf16>
    %cst = arith.constant dense<0.000000e+00> : vector<128x128xf32>
    %5 = tpu.matmul %3, %4, %cst {dimension_numbers = #tpu.dot_dimension_numbers<[1], [0], [0], [1], [0, 0, 1, 1], [], []>} : vector<128x128xbf16>, vector<128x128xbf16>, vector<128x128xf32> -> vector<128x128xf32>
    %c0_4 = arith.constant 0 : index
    %c0_5 = arith.constant 0 : index
    %6 = vector.load %arg4[%c0_4, %c0_5] : memref<1x128xf32, #tpu.memory_space<vmem>>, vector<1x128xf32>
    %7 = vector.broadcast %6 : vector<1x128xf32> to vector<128x128xf32>
    %8 = arith.addf %5, %7 : vector<128x128xf32>
    %c0_6 = arith.constant 0 : index
    %c0_7 = arith.constant 0 : index
    %9 = vector.load %arg5[%c0_6, %c0_7] : memref<128x128xbf16, #tpu.memory_space<vmem>>, vector<128x128xbf16>
    %cst_8 = arith.constant dense<0.000000e+00> : vector<128x128xf32>
    %10 = tpu.matmul %3, %9, %cst_8 {dimension_numbers = #tpu.dot_dimension_numbers<[1], [0], [0], [1], [0, 0, 1, 1], [], []>} : vector<128x128xbf16>, vector<128x128xbf16>, vector<128x128xf32> -> vector<128x128xf32>
    %c0_9 = arith.constant 0 : index
    %c0_10 = arith.constant 0 : index
    %11 = vector.load %arg6[%c0_9, %c0_10] : memref<1x128xf32, #tpu.memory_space<vmem>>, vector<1x128xf32>
    %12 = vector.broadcast %11 : vector<1x128xf32> to vector<128x128xf32>
    %13 = arith.addf %10, %12 : vector<128x128xf32>
    %14 = arith.negf %8 : vector<128x128xf32>
    %15 = math.exp %14 : vector<128x128xf32>
    %cst_11 = arith.constant 1.000000e+00 : f32
    %16 = vector.broadcast %cst_11 : f32 to vector<128x128xf32>
    %17 = arith.addf %16, %15 : vector<128x128xf32>
    %18 = arith.divf %16, %17 : vector<128x128xf32>
    %19 = arith.mulf %8, %18 : vector<128x128xf32>
    %20 = arith.mulf %19, %13 : vector<128x128xf32>
    %c0_12 = arith.constant 0 : index
    %c0_13 = arith.constant 0 : index
    %21 = vector.load %arg10[%c0_12, %c0_13] : memref<128x128xf32, #tpu.memory_space<vmem>>, vector<128x128xf32>
    %22 = arith.truncf %20 : vector<128x128xf32> to vector<128x128xbf16>
    %c0_14 = arith.constant 0 : index
    %c0_15 = arith.constant 0 : index
    %23 = vector.load %arg7[%c0_14, %c0_15] : memref<128x128xbf16, #tpu.memory_space<vmem>>, vector<128x128xbf16>
    %cst_16 = arith.constant dense<0.000000e+00> : vector<128x128xf32>
    %24 = tpu.matmul %22, %23, %cst_16 {dimension_numbers = #tpu.dot_dimension_numbers<[1], [0], [0], [1], [0, 0, 1, 1], [], []>} : vector<128x128xbf16>, vector<128x128xbf16>, vector<128x128xf32> -> vector<128x128xf32>
    %25 = arith.addf %21, %24 : vector<128x128xf32>
    %c0_17 = arith.constant 0 : index
    %c0_18 = arith.constant 0 : index
    %26 = vector.load %arg10[%c0_17, %c0_18] : memref<128x128xf32, #tpu.memory_space<vmem>>, vector<128x128xf32>
    tpu.vector_store %arg10[%c0_17, %c0_18], %25 {strides = array<i32>} : memref<128x128xf32, #tpu.memory_space<vmem>>, vector<128x128xf32>,
    %c1_i32 = arith.constant 1 : i32
    %27 = arith.cmpi eq, %arg1, %c1_i32 : i32
    %28 = arith.extui %27 : i1 to i32
    %c0_i32_19 = arith.constant 0 : i32
    %29 = arith.cmpi ne, %28, %c0_i32_19 : i32
    scf.if %29 {
      %c0_20 = arith.constant 0 : index
      %c0_21 = arith.constant 0 : index
      %30 = vector.load %arg10[%c0_20, %c0_21] : memref<128x128xf32, #tpu.memory_space<vmem>>, vector<128x128xf32>
      %c0_22 = arith.constant 0 : index
      %c0_23 = arith.constant 0 : index
      %31 = vector.load %arg9[%c0_22, %c0_23] : memref<128x128xf32, #tpu.memory_space<vmem>>, vector<128x128xf32>
      tpu.vector_store %arg9[%c0_22, %c0_23], %30 {strides = array<i32>} : memref<128x128xf32, #tpu.memory_space<vmem>>, vector<128x128xf32>,
    } else {
    }
    return
  }
  func.func @transform_0(%arg0: i32, %arg1: i32) -> (i32, i32) {
    %c0_i32 = arith.constant 0 : i32
    %c0_i32_0 = arith.constant 0 : i32
    return %arg0, %c0_i32 : i32, i32
  }
  func.func @transform_1(%arg0: i32, %arg1: i32) -> (i32, i32) {
    %c0_i32 = arith.constant 0 : i32
    %c0_i32_0 = arith.constant 0 : i32
    return %c0_i32, %arg1 : i32, i32
  }
  func.func @transform_2(%arg0: i32, %arg1: i32) -> (i32, i32) {
    %c0_i32 = arith.constant 0 : i32
    %c0_i32_0 = arith.constant 0 : i32
    return %c0_i32, %arg1 : i32, i32
  }
  func.func @transform_3(%arg0: i32, %arg1: i32) -> (i32, i32) {
    %c0_i32 = arith.constant 0 : i32
    %c0_i32_0 = arith.constant 0 : i32
    return %c0_i32, %arg1 : i32, i32
  }
  func.func @transform_4(%arg0: i32, %arg1: i32) -> (i32, i32) {
    %c0_i32 = arith.constant 0 : i32
    %c0_i32_0 = arith.constant 0 : i32
    return %c0_i32, %arg1 : i32, i32
  }
  func.func @transform_5(%arg0: i32, %arg1: i32) -> (i32, i32) {
    %c0_i32 = arith.constant 0 : i32
    %c0_i32_0 = arith.constant 0 : i32
    return %arg1, %c0_i32 : i32, i32
  }
  func.func @transform_6(%arg0: i32, %arg1: i32) -> (i32, i32) {
    %c0_i32 = arith.constant 0 : i32
    %c0_i32_0 = arith.constant 0 : i32
    %c0_i32_1 = arith.constant 0 : i32
    return %c0_i32, %c0_i32_0 : i32, i32
  }
  func.func @transform_7(%arg0: i32, %arg1: i32) -> (i32, i32) {
    %c0_i32 = arith.constant 0 : i32
    %c0_i32_0 = arith.constant 0 : i32
    return %arg0, %c0_i32 : i32, i32
  }
}

</mosaic_0001>

<llo_original>
// kernel: tpu_custom_call.1
$region0: #{tpu_custom_call.1}
  #allocation0 [shape = 'u32[]', space=smem, size = 0x4, offset = 0x4, fixed_abs, tag = 'smem constant byte address 0x4 - core index']
  #allocation1 [shape = 'u32[144,128]{1,0:T(1,128)}', space=vmem, size = 0x12000, scoped, tag = 'internal scratch']
  #allocation2 [shape = 'f32[128,128]{1,0:T(8,128)}', space=vmem, size = 0x10000, scoped, tag = 'scratch operand']
  %s0 = inlined_call_operand.hbm [shape: bf16[256,128], index: 0, kind: input, shape index: {}]
  %s1 = inlined_call_operand.hbm [shape: bf16[128,256], index: 1, kind: input, shape index: {}]
  %s2 = inlined_call_operand.vmem [shape: f32[1,256], index: 2, kind: input, shape index: {}]
  %s3 = inlined_call_operand.hbm [shape: bf16[128,256], index: 3, kind: input, shape index: {}]
  %s4 = inlined_call_operand.vmem [shape: f32[1,256], index: 4, kind: input, shape index: {}]
  %s5 = inlined_call_operand.hbm [shape: bf16[256,128], index: 5, kind: input, shape index: {}]
  %s6 = inlined_call_operand.vmem [shape: f32[1,128], index: 6, kind: input, shape index: {}]
  %s7 = inlined_call_operand.hbm [shape: f32[256,128], index: 7, kind: output, shape index: {}]
  %s8 = sld [smem:[#allocation0]]
  $region85: #{tpu_custom_call.1} parent=0
    _
  %s10 = ssub.s32 1, %s8
  %s11 = scalar_select 0, %s10, %s8
  $region1: #{tpu_custom_call.1} parent=0
    #allocation3 [shape = 'u8[65536]{0}', space=vmem, size = 0x10000, scoped, tag = 'input window, operand 0']
    #allocation4 [shape = 's32[2]{0}', space=sflag, size = 0x8, scoped, tag = 'scoped memory for tpu_custom_call.1']
    #allocation5 [shape = 's32[2]{0}', space=sflag, size = 0x8, scoped, tag = 'scoped memory for tpu_custom_call.1']
    #allocation6 [shape = 'u8[65536]{0}', space=vmem, size = 0x10000, scoped, tag = 'input window, operand 1']
    #allocation7 [shape = 's32[2]{0}', space=sflag, size = 0x8, scoped, tag = 'scoped memory for tpu_custom_call.1']
    #allocation8 [shape = 'u8[65536]{0}', space=vmem, size = 0x10000, scoped, tag = 'input window, operand 3']
    #allocation9 [shape = 'u8[65536]{0}', space=vmem, size = 0x10000, scoped, tag = 'input window, operand 5']
    #allocation10 [shape = 's32[2]{0}', space=sflag, size = 0x8, scoped, tag = 'scoped memory for tpu_custom_call.1']
    #allocation11 [shape = 'u8[131072]{0}', space=vmem, size = 0x20000, scoped, tag = 'output window, operand 0']
    %12 = vsyncpa [#allocation4], 0
    %s13 = scalar_lea.sflag [#allocation4], 1
    %14 = vsyncpa %s13, 0
    %15 = vsyncpa [#allocation7], 0
    %s16 = scalar_lea.sflag [#allocation7], 1
    %17 = vsyncpa %s16, 0
    %18 = vsyncpa [#allocation10], 0
    %s19 = scalar_lea.sflag [#allocation10], 1
    %20 = vsyncpa %s19, 0
    %21 = vsyncpa [#allocation5], 0
    %s22 = scalar_lea.sflag [#allocation5], 1
    %23 = vsyncpa %s22, 0
    loop: start=0, step=1, limit=6
    $region2: #{tpu_custom_call.1} parent=1 // loop_pre_header
      _
    $region3: #{tpu_custom_call.1} parent=1 // loop_header
      %s25 = sphi 0, %s29
      %p26 = scmp.ge.s32.totalorder %s25, 6
      %s32 = sphi 0, %s44
      %s33 = sphi 0, %s40
      %s34 = sphi 0, %s32
      %s35 = sphi 0, %s33
      %s36 = sphi 0, %s34
      %s37 = sphi 0, %s35
      %s47 = sphi 0, %s49
      %s50 = sphi 0, %s47
      %s51 = sphi 0, %s50
      %s67 = sphi 0, %s51
      %s73 = sphi 0, %s75
      %s76 = sphi 0, %s73
      %s77 = sphi 0, %s76
      %s93 = sphi 0, %s77
      %s99 = sphi 0, %s101
      %s102 = sphi 0, %s99
      %s103 = sphi 0, %s102
      %s119 = sphi 0, %s103
      %s125 = sphi 0, %s127
      %s128 = sphi 0, %s125
      %s129 = sphi 0, %s128
      %s145 = sphi 0, %s129
      %s151 = sphi 0, %s153
      %s154 = sphi 0, %s151
      %s155 = sphi 0, %s154
      %s171 = sphi 0, %s155
      %s177 = sphi 0, %s179
      %s180 = sphi 0, %s177
      %s181 = sphi 0, %s180
      %s197 = sphi 0, %s181
      %s201 = sphi 0, %s201
      %s203 = sphi 0, %s201
      %s204 = sphi 0, %s203
      %s218 = sphi 0, %s204
      %s224 = sphi 0, %s226
      %s227 = sphi 0, %s224
      %s228 = sphi 0, %s227
      %s244 = sphi 0, %s228
    $region4: #{tpu_custom_call.1} parent=1 // loop_header_branch
      %28 = sbr.rel (%p26) target = $region8
    $region5: #{tpu_custom_call.1} parent=1 // loop_body
      %s30 = ssub.s32 %s25, 1
      %s31 = ssub.s32 %s25, 2
      %s38 = sadd.s32 1, %s33
      %p39 = scmp.ge.s32.totalorder %s38, 2
      %s40 = scalar_select %p39, 0, %s38
      %s41 = sadd.s32 1, %s32
      %s42 = scalar_select %p39, %s41, %s32
      %p43 = scmp.ge.s32.totalorder %s42, 2
      %s44 = scalar_select %p43, 0, %s42
      %s45 = ssub.s32 %s32, %s44
      %p46 = scmp.eq.s32.totalorder %s45, 0
      %s48 = sadd.s32 %s47, 1
      %s49 = scalar_select %p46, %s47, %s48
      %p52 = pneg %p46
      %p53 = scmp.eq.s32.totalorder %s25, 3
      %p54 = por %p52, %p53
      %p55 = scmp.ne.s32.totalorder %s47, %s50
      %p56 = scmp.eq.s32.totalorder %s25, 0
      %p57 = por %p55, %p56
      %p58 = scmp.ne.s32.totalorder %s47, %s50
      %p59 = scmp.eq.s32.totalorder %s30, 3
      %p60 = por %p58, %p59
      %p61 = scmp.ne.s32.totalorder %s50, %s51
      %p62 = scmp.eq.s32.totalorder %s30, 0
      %p63 = por %p61, %p62
      %p64 = scmp.ne.s32.totalorder %s50, %s51
      %p65 = scmp.eq.s32.totalorder %s31, 3
      %p66 = por %p64, %p65
      %p68 = scmp.ne.s32.totalorder %s51, %s67
      %p69 = scmp.eq.s32.totalorder %s31, 0
      %p70 = por %p68, %p69
      %s71 = ssub.s32 %s33, %s40
      %p72 = scmp.eq.s32.totalorder %s71, 0
      %s74 = sadd.s32 %s73, 1
      %s75 = scalar_select %p72, %s73, %s74
      %p78 = pneg %p72
      %p79 = scmp.eq.s32.totalorder %s25, 3
      %p80 = por %p78, %p79
      %p81 = scmp.ne.s32.totalorder %s73, %s76
      %p82 = scmp.eq.s32.totalorder %s25, 0
      %p83 = por %p81, %p82
      %p84 = scmp.ne.s32.totalorder %s73, %s76
      %p85 = scmp.eq.s32.totalorder %s30, 3
      %p86 = por %p84, %p85
      %p87 = scmp.ne.s32.totalorder %s76, %s77
      %p88 = scmp.eq.s32.totalorder %s30, 0
      %p89 = por %p87, %p88
      %p90 = scmp.ne.s32.totalorder %s76, %s77
      %p91 = scmp.eq.s32.totalorder %s31, 3
      %p92 = por %p90, %p91
      %p94 = scmp.ne.s32.totalorder %s77, %s93
      %p95 = scmp.eq.s32.totalorder %s31, 0
      %p96 = por %p94, %p95
      %s97 = ssub.s32 %s33, %s40
      %p98 = scmp.eq.s32.totalorder %s97, 0
      %s100 = sadd.s32 %s99, 1
      %s101 = scalar_select %p98, %s99, %s100
      %p104 = pneg %p98
      %p105 = scmp.eq.s32.totalorder %s25, 3
      %p106 = por %p104, %p105
      %p107 = scmp.ne.s32.totalorder %s99, %s102
      %p108 = scmp.eq.s32.totalorder %s25, 0
      %p109 = por %p107, %p108
      %p110 = scmp.ne.s32.totalorder %s99, %s102
      %p111 = scmp.eq.s32.totalorder %s30, 3
      %p112 = por %p110, %p111
      %p113 = scmp.ne.s32.totalorder %s102, %s103
      %p114 = scmp.eq.s32.totalorder %s30, 0
      %p115 = por %p113, %p114
      %p116 = scmp.ne.s32.totalorder %s102, %s103
      %p117 = scmp.eq.s32.totalorder %s31, 3
      %p118 = por %p116, %p117
      %p120 = scmp.ne.s32.totalorder %s103, %s119
      %p121 = scmp.eq.s32.totalorder %s31, 0
      %p122 = por %p120, %p121
      %s123 = ssub.s32 %s33, %s40
      %p124 = scmp.eq.s32.totalorder %s123, 0
      %s126 = sadd.s32 %s125, 1
      %s127 = scalar_select %p124, %s125, %s126
      %p130 = pneg %p124
      %p131 = scmp.eq.s32.totalorder %s25, 3
      %p132 = por %p130, %p131
      %p133 = scmp.ne.s32.totalorder %s125, %s128
      %p134 = scmp.eq.s32.totalorder %s25, 0
      %p135 = por %p133, %p134
      %p136 = scmp.ne.s32.totalorder %s125, %s128
      %p137 = scmp.eq.s32.totalorder %s30, 3
      %p138 = por %p136, %p137
      %p139 = scmp.ne.s32.totalorder %s128, %s129
      %p140 = scmp.eq.s32.totalorder %s30, 0
      %p141 = por %p139, %p140
      %p142 = scmp.ne.s32.totalorder %s128, %s129
      %p143 = scmp.eq.s32.totalorder %s31, 3
      %p144 = por %p142, %p143
      %p146 = scmp.ne.s32.totalorder %s129, %s145
      %p147 = scmp.eq.s32.totalorder %s31, 0
      %p148 = por %p146, %p147
      %s149 = ssub.s32 %s33, %s40
      %p150 = scmp.eq.s32.totalorder %s149, 0
      %s152 = sadd.s32 %s151, 1
      %s153 = scalar_select %p150, %s151, %s152
      %p156 = pneg %p150
      %p157 = scmp.eq.s32.totalorder %s25, 3
      %p158 = por %p156, %p157
      %p159 = scmp.ne.s32.totalorder %s151, %s154
      %p160 = scmp.eq.s32.totalorder %s25, 0
      %p161 = por %p159, %p160
      %p162 = scmp.ne.s32.totalorder %s151, %s154
      %p163 = scmp.eq.s32.totalorder %s30, 3
      %p164 = por %p162, %p163
      %p165 = scmp.ne.s32.totalorder %s154, %s155
      %p166 = scmp.eq.s32.totalorder %s30, 0
      %p167 = por %p165, %p166
      %p168 = scmp.ne.s32.totalorder %s154, %s155
      %p169 = scmp.eq.s32.totalorder %s31, 3
      %p170 = por %p168, %p169
      %p172 = scmp.ne.s32.totalorder %s155, %s171
      %p173 = scmp.eq.s32.totalorder %s31, 0
      %p174 = por %p172, %p173
      %s175 = ssub.s32 %s33, %s40
      %p176 = scmp.eq.s32.totalorder %s175, 0
      %s178 = sadd.s32 %s177, 1
      %s179 = scalar_select %p176, %s177, %s178
      %p182 = pneg %p176
      %p183 = scmp.eq.s32.totalorder %s25, 3
      %p184 = por %p182, %p183
      %p185 = scmp.ne.s32.totalorder %s177, %s180
      %p186 = scmp.eq.s32.totalorder %s25, 0
      %p187 = por %p185, %p186
      %p188 = scmp.ne.s32.totalorder %s177, %s180
      %p189 = scmp.eq.s32.totalorder %s30, 3
      %p190 = por %p188, %p189
      %p191 = scmp.ne.s32.totalorder %s180, %s181
      %p192 = scmp.eq.s32.totalorder %s30, 0
      %p193 = por %p191, %p192
      %p194 = scmp.ne.s32.totalorder %s180, %s181
      %p195 = scmp.eq.s32.totalorder %s31, 3
      %p196 = por %p194, %p195
      %p198 = scmp.ne.s32.totalorder %s181, %s197
      %p199 = scmp.eq.s32.totalorder %s31, 0
      %p200 = por %p198, %p199
      %s202 = sadd.s32 %s201, 1
      %p205 = scmp.eq.s32.totalorder %s25, 3
      %p206 = scmp.ne.s32.totalorder %s201, %s203
      %p207 = scmp.eq.s32.totalorder %s25, 0
      %p208 = por %p206, %p207
      %p209 = scmp.ne.s32.totalorder %s201, %s203
      %p210 = scmp.eq.s32.totalorder %s30, 3
      %p211 = por %p209, %p210
      %p212 = scmp.ne.s32.totalorder %s203, %s204
      %p213 = scmp.eq.s32.totalorder %s30, 0
      %p214 = por %p212, %p213
      %p215 = scmp.ne.s32.totalorder %s203, %s204
      %p216 = scmp.eq.s32.totalorder %s31, 3
      %p217 = por %p215, %p216
      %p219 = scmp.ne.s32.totalorder %s204, %s218
      %p220 = scmp.eq.s32.totalorder %s31, 0
      %p221 = por %p219, %p220
      %s222 = ssub.s32 %s32, %s44
      %p223 = scmp.eq.s32.totalorder %s222, 0
      %s225 = sadd.s32 %s224, 1
      %s226 = scalar_select %p223, %s224, %s225
      %p229 = pneg %p223
      %p230 = scmp.eq.s32.totalorder %s25, 3
      %p231 = por %p229, %p230
      %p232 = scmp.ne.s32.totalorder %s224, %s227
      %p233 = scmp.eq.s32.totalorder %s25, 0
      %p234 = por %p232, %p233
      %p235 = scmp.ne.s32.totalorder %s224, %s227
      %p236 = scmp.eq.s32.totalorder %s30, 3
      %p237 = por %p235, %p236
      %p238 = scmp.ne.s32.totalorder %s227, %s228
      %p239 = scmp.eq.s32.totalorder %s30, 0
      %p240 = por %p238, %p239
      %p241 = scmp.ne.s32.totalorder %s227, %s228
      %p242 = scmp.eq.s32.totalorder %s31, 3
      %p243 = por %p241, %p242
      %p245 = scmp.ne.s32.totalorder %s228, %s244
      %p246 = scmp.eq.s32.totalorder %s31, 0
      %p247 = por %p245, %p246
      %p248 = scmp.le.s32.totalorder 1, %s25
      %p249 = scmp.lt.s32.totalorder %s25, 5
      %p250 = pnand %p248, %p249
      %p251 = pneg %p250
      // Predicated region
      $region9: #{tpu_custom_call.1} parent=5 // pred_check
        _
      $region10: #{tpu_custom_call.1} parent=5 // pred_check_branch
        %253 = sbr.rel (%p250) target = $region12
      $region11: #{tpu_custom_call.1} parent=5 // pred_region
        %s254 = ssub.s32 %s25, 1
        // Predicated region
        $region13: #{tpu_custom_call.1} parent=11 // pred_check
          %p255 = pneg %p214
        $region14: #{tpu_custom_call.1} parent=11 // pred_check_branch
          %257 = sbr.rel (%p255) target = $region16
        $region15: #{tpu_custom_call.1} parent=11 // pred_region
          _
        $region16: #{tpu_custom_call.1} parent=11 // pred_fallthru
          _
      $region12: #{tpu_custom_call.1} parent=5 // pred_fallthru
        _
      %p258 = scmp.lt.s32.totalorder %s25, 4
      // Predicated region
      $region17: #{tpu_custom_call.1} parent=5 // pred_check
        %p259 = pneg %p258
      $region18: #{tpu_custom_call.1} parent=5 // pred_check_branch
        %261 = sbr.rel (%p259) target = $region20
      $region19: #{tpu_custom_call.1} parent=5 // pred_region
        // Predicated region
        $region21: #{tpu_custom_call.1} parent=19 // pred_check
          %p262 = pneg %p57
        $region22: #{tpu_custom_call.1} parent=19 // pred_check_branch
          %264 = sbr.rel (%p262) target = $region24
        $region23: #{tpu_custom_call.1} parent=19 // pred_region
          %s265 = sand.u32 %s47, 1
          %s266 = scalar_lea.sflag [#allocation4], %s265
          %s267 = sand.u32 %s47, 1
          %s268 = smul.addr %s267, 64
          %s269 = scalar_lea.vmem [#allocation3], %s268
          %s270 = smul.u32 16, %s32
          %s272 = ssub.s32 1024, 1024
          %273 = vsyncadd %s266, %s272
          %s274 = smul.addr %s270, 64
          %s275 = scalar_lea.hbm %s0, %s274
          %s276 = sshll.u32 %s269, 4
          %s277 = int_to_ptr.vmem [resolvable:$true] %s276
          %282 = dma.hbm_to_vmem [thread:$0]  %s275, 1024, %s277, %s266, 64, 64, 4
        $region24: #{tpu_custom_call.1} parent=19 // pred_fallthru
          _
        // Predicated region
        $region25: #{tpu_custom_call.1} parent=19 // pred_check
          %p283 = pneg %p83
        $region26: #{tpu_custom_call.1} parent=19 // pred_check_branch
          %285 = sbr.rel (%p283) target = $region28
        $region27: #{tpu_custom_call.1} parent=19 // pred_region
          %s286 = sand.u32 %s25, 1
          %s287 = scalar_lea.sflag [#allocation7], %s286
          %s288 = sand.u32 %s73, 1
          %s289 = smul.addr %s288, 64
          %s290 = scalar_lea.vmem [#allocation6], %s289
          %s292 = ssub.s32 1024, 1024
          %293 = vsyncadd %s287, %s292
          %s294 = smul.addr %s33, 64
          %s295 = scalar_lea.hbm %s1, %s294
          %s296 = sshll.u32 %s290, 4
          %s297 = int_to_ptr.vmem [resolvable:$true] %s296
          %302 = dma.hbm_to_vmem [thread:$0]  %s295, 1024, %s297, %s287, 128, 64, 4
        $region28: #{tpu_custom_call.1} parent=19 // pred_fallthru
          _
        // Predicated region
        $region29: #{tpu_custom_call.1} parent=19 // pred_check
          %p303 = pneg %p109
        $region30: #{tpu_custom_call.1} parent=19 // pred_check_branch
          %305 = sbr.rel (%p303) target = $region32
        $region31: #{tpu_custom_call.1} parent=19 // pred_region
          %p306 = scmp.lt.s32.totalorder %s33, 1
          %s307 = scalar_select %p306, %s33, 1
          %s308 = scalar_lea.vmem %s2, %s307
        $region32: #{tpu_custom_call.1} parent=19 // pred_fallthru
          _
        // Predicated region
        $region33: #{tpu_custom_call.1} parent=19 // pred_check
          %p309 = pneg %p135
        $region34: #{tpu_custom_call.1} parent=19 // pred_check_branch
          %311 = sbr.rel (%p309) target = $region36
        $region35: #{tpu_custom_call.1} parent=19 // pred_region
          %s312 = sand.u32 %s25, 1
          %s313 = scalar_lea.sflag [#allocation7], %s312
          %s314 = sand.u32 %s125, 1
          %s315 = smul.addr %s314, 64
          %s316 = scalar_lea.vmem [#allocation8], %s315
          %s318 = ssub.s32 1024, 1024
          %319 = vsyncadd %s313, %s318
          %s320 = smul.addr %s33, 64
          %s321 = scalar_lea.hbm %s3, %s320
          %s322 = sshll.u32 %s316, 4
          %s323 = int_to_ptr.vmem [resolvable:$true] %s322
          %328 = dma.hbm_to_vmem [thread:$0]  %s321, 1024, %s323, %s313, 128, 64, 4
        $region36: #{tpu_custom_call.1} parent=19 // pred_fallthru
          _
        // Predicated region
        $region37: #{tpu_custom_call.1} parent=19 // pred_check
          %p329 = pneg %p161
        $region38: #{tpu_custom_call.1} parent=19 // pred_check_branch
          %331 = sbr.rel (%p329) target = $region40
        $region39: #{tpu_custom_call.1} parent=19 // pred_region
          %p332 = scmp.lt.s32.totalorder %s33, 1
          %s333 = scalar_select %p332, %s33, 1
          %s334 = scalar_lea.vmem %s4, %s333
        $region40: #{tpu_custom_call.1} parent=19 // pred_fallthru
          _
        // Predicated region
        $region41: #{tpu_custom_call.1} parent=19 // pred_check
          %p335 = pneg %p187
        $region42: #{tpu_custom_call.1} parent=19 // pred_check_branch
          %337 = sbr.rel (%p335) target = $region44
        $region43: #{tpu_custom_call.1} parent=19 // pred_region
          %s338 = sand.u32 %s177, 1
          %s339 = scalar_lea.sflag [#allocation10], %s338
          %s340 = sand.u32 %s177, 1
          %s341 = smul.addr %s340, 64
          %s342 = scalar_lea.vmem [#allocation9], %s341
          %s343 = smul.u32 16, %s33
          %s345 = ssub.s32 1024, 1024
          %346 = vsyncadd %s339, %s345
          %s347 = smul.addr %s343, 64
          %s348 = scalar_lea.hbm %s5, %s347
          %s349 = sshll.u32 %s342, 4
          %s350 = int_to_ptr.vmem [resolvable:$true] %s349
          %355 = dma.hbm_to_vmem [thread:$0]  %s348, 1024, %s350, %s339, 64, 64, 4
        $region44: #{tpu_custom_call.1} parent=19 // pred_fallthru
          _
      $region20: #{tpu_custom_call.1} parent=5 // pred_fallthru
        _
      %p356 = scmp.le.s32.totalorder 1, %s25
      %p357 = scmp.lt.s32.totalorder %s25, 5
      %p358 = pnand %p356, %p357
      %p359 = pneg %p358
      // Predicated region
      $region45: #{tpu_custom_call.1} parent=5 // pred_check
        _
      $region46: #{tpu_custom_call.1} parent=5 // pred_check_branch
        %361 = sbr.rel (%p358) target = $region48
      $region47: #{tpu_custom_call.1} parent=5 // pred_region
        %s362 = ssub.s32 %s25, 1
        %s363 = sand.u32 %s50, 1
        %s364 = scalar_lea.sflag [#allocation4], %s363
        %s365 = sand.u32 %s50, 1
        %s366 = smul.addr %s365, 64
        %s367 = scalar_lea.vmem [#allocation3], %s366
        // Predicated region
        $region49: #{tpu_custom_call.1} parent=47 // pred_check
          %p368 = pneg %p63
        $region50: #{tpu_custom_call.1} parent=47 // pred_check_branch
          %370 = sbr.rel (%p368) target = $region52
        $region51: #{tpu_custom_call.1} parent=47 // pred_region
          %371 = dma.done %s364, 1024
        $region52: #{tpu_custom_call.1} parent=47 // pred_fallthru
          _
        %s372 = sand.u32 %s30, 1
        %s373 = scalar_lea.sflag [#allocation7], %s372
        %s374 = sand.u32 %s76, 1
        %s375 = smul.addr %s374, 64
        %s376 = scalar_lea.vmem [#allocation6], %s375
        // Predicated region
        $region53: #{tpu_custom_call.1} parent=47 // pred_check
          %p377 = pneg %p89
        $region54: #{tpu_custom_call.1} parent=47 // pred_check_branch
          %379 = sbr.rel (%p377) target = $region56
        $region55: #{tpu_custom_call.1} parent=47 // pred_region
          %380 = dma.done %s373, 1024
        $region56: #{tpu_custom_call.1} parent=47 // pred_fallthru
          _
        %s381 = sand.u32 %s30, 1
        %s382 = scalar_lea.sflag [#allocation7], %s381
        %s383 = sand.u32 %s128, 1
        %s384 = smul.addr %s383, 64
        %s385 = scalar_lea.vmem [#allocation8], %s384
        // Predicated region
        $region57: #{tpu_custom_call.1} parent=47 // pred_check
          %p386 = pneg %p141
        $region58: #{tpu_custom_call.1} parent=47 // pred_check_branch
          %388 = sbr.rel (%p386) target = $region60
        $region59: #{tpu_custom_call.1} parent=47 // pred_region
          %389 = dma.done %s382, 1024
        $region60: #{tpu_custom_call.1} parent=47 // pred_fallthru
          _
        %s390 = sand.u32 %s180, 1
        %s391 = scalar_lea.sflag [#allocation10], %s390
        %s392 = sand.u32 %s180, 1
        %s393 = smul.addr %s392, 64
        %s394 = scalar_lea.vmem [#allocation9], %s393
        // Predicated region
        $region61: #{tpu_custom_call.1} parent=47 // pred_check
          %p395 = pneg %p193
        $region62: #{tpu_custom_call.1} parent=47 // pred_check_branch
          %397 = sbr.rel (%p395) target = $region64
        $region63: #{tpu_custom_call.1} parent=47 // pred_region
          %398 = dma.done %s391, 1024
        $region64: #{tpu_custom_call.1} parent=47 // pred_fallthru
          _
        %s399 = sand.u32 %s50, 1
        %s400 = scalar_lea.sflag [#allocation4], %s399
        %s401 = sand.u32 %s50, 1
        %s402 = smul.addr %s401, 64
        %s403 = scalar_lea.vmem [#allocation3], %s402
        %p404 = pneg %p63
        %p405 = pneg %p60
        %s406 = sand.u32 %s30, 1
        %s407 = scalar_lea.sflag [#allocation7], %s406
        %s408 = sand.u32 %s76, 1
        %s409 = smul.addr %s408, 64
        %s410 = scalar_lea.vmem [#allocation6], %s409
        %p411 = pneg %p89
        %p412 = pneg %p86
        %p413 = scmp.lt.s32.totalorder %s35, 1
        %s414 = scalar_select %p413, %s35, 1
        %s415 = scalar_lea.vmem %s2, %s414
        %p416 = pneg %p115
        %p417 = pneg %p112
        %s418 = sand.u32 %s30, 1
        %s419 = scalar_lea.sflag [#allocation7], %s418
        %s420 = sand.u32 %s128, 1
        %s421 = smul.addr %s420, 64
        %s422 = scalar_lea.vmem [#allocation8], %s421
        %p423 = pneg %p141
        %p424 = pneg %p138
        %p425 = scmp.lt.s32.totalorder %s35, 1
        %s426 = scalar_select %p425, %s35, 1
        %s427 = scalar_lea.vmem %s4, %s426
        %p428 = pneg %p167
        %p429 = pneg %p164
        %s430 = sand.u32 %s180, 1
        %s431 = scalar_lea.sflag [#allocation10], %s430
        %s432 = sand.u32 %s180, 1
        %s433 = smul.addr %s432, 64
        %s434 = scalar_lea.vmem [#allocation9], %s433
        %p435 = pneg %p193
        %p436 = pneg %p190
        %p437 = pneg %p214
        %p438 = pneg %p211
        %p439 = pneg %p240
        %p440 = pneg %p237
        %s441 = sand.u32 %s227, 1
        %s442 = scalar_lea.sflag [#allocation5], %s441
        %s443 = sand.u32 %s227, 1
        %s444 = smul.addr %s443, 128
        %s445 = scalar_lea.vmem [#allocation11], %s444
        %s446 = smul.u32 16, %s34
        %p447 = scmp.lt.s32.totalorder %s35, 1
        %s448 = scalar_select %p447, %s35, 1
        %s449 = scalar_lea.vmem %s2, %s448
        %p450 = scmp.lt.s32.totalorder %s35, 1
        %s451 = scalar_select %p450, %s35, 1
        %s452 = scalar_lea.vmem %s4, %s451
        %s453 = smul.u32 16, %s35
        %s454 = smul.u32 16, %s34
        %p456 = scmp.eq.s32.totalorder %s35, 0
        // Predicated region
        $region65: #{tpu_custom_call.1} parent=47 // pred_check
          %p457 = pneg %p456
        $region66: #{tpu_custom_call.1} parent=47 // pred_check_branch
          %459 = sbr.rel (%p457) target = $region68
        $region67: #{tpu_custom_call.1} parent=47 // pred_region
          %v460 = vld [vmem:[%s6] sm:$0x1]
          %v462 = vlaneseq
          %v463 = vshrl.u32 %v462, 7
          %v464 = vsub.s32 0, %v463
          %v465 = vrot.slane %v460, %v464
          %467 = vst [vmem:[#allocation2] sm:$0xff] %v465
          %468 = vst [vmem:[#allocation2 + $0x8] sm:$0xff] %v465
          %469 = vst [vmem:[#allocation2 + $0x10] sm:$0xff] %v465
          %470 = vst [vmem:[#allocation2 + $0x18] sm:$0xff] %v465
          %471 = vst [vmem:[#allocation2 + $0x20] sm:$0xff] %v465
          %472 = vst [vmem:[#allocation2 + $0x28] sm:$0xff] %v465
          %473 = vst [vmem:[#allocation2 + $0x30] sm:$0xff] %v465
          %474 = vst [vmem:[#allocation2 + $0x38] sm:$0xff] %v465
          %475 = vst [vmem:[#allocation2 + $0x40] sm:$0xff] %v465
          %476 = vst [vmem:[#allocation2 + $0x48] sm:$0xff] %v465
          %477 = vst [vmem:[#allocation2 + $0x50] sm:$0xff] %v465
          %478 = vst [vmem:[#allocation2 + $0x58] sm:$0xff] %v465
          %479 = vst [vmem:[#allocation2 + $0x60] sm:$0xff] %v465
          %480 = vst [vmem:[#allocation2 + $0x68] sm:$0xff] %v465
          %481 = vst [vmem:[#allocation2 + $0x70] sm:$0xff] %v465
          %482 = vst [vmem:[#allocation2 + $0x78] sm:$0xff] %v465
        $region68: #{tpu_custom_call.1} parent=47 // pred_fallthru
          _
        %v483 = vld [vmem:[%s367] sm:$0xf]
        %v484 = vld [vmem:[%s367 + $0x4] sm:$0xf]
        %v485 = vld [vmem:[%s367 + $0x8] sm:$0xf]
        %v486 = vld [vmem:[%s367 + $0xc] sm:$0xf]
        %v487 = vld [vmem:[%s367 + $0x10] sm:$0xf]
        %v488 = vld [vmem:[%s367 + $0x14] sm:$0xf]
        %v489 = vld [vmem:[%s367 + $0x18] sm:$0xf]
        %v490 = vld [vmem:[%s367 + $0x1c] sm:$0xf]
        %v491 = vld [vmem:[%s367 + $0x20] sm:$0xf]
        %v492 = vld [vmem:[%s367 + $0x24] sm:$0xf]
        %v493 = vld [vmem:[%s367 + $0x28] sm:$0xf]
        %v494 = vld [vmem:[%s367 + $0x2c] sm:$0xf]
        %v495 = vld [vmem:[%s367 + $0x30] sm:$0xf]
        %v496 = vld [vmem:[%s367 + $0x34] sm:$0xf]
        %v497 = vld [vmem:[%s367 + $0x38] sm:$0xf]
        %v498 = vld [vmem:[%s367 + $0x3c] sm:$0xf]
        %v499 = vld [vmem:[%s376] sm:$0xf]
        %v500 = vld [vmem:[%s376 + $0x4] sm:$0xf]
        %v501 = vld [vmem:[%s376 + $0x8] sm:$0xf]
        %v502 = vld [vmem:[%s376 + $0xc] sm:$0xf]
        %v503 = vld [vmem:[%s376 + $0x10] sm:$0xf]
        %v504 = vld [vmem:[%s376 + $0x14] sm:$0xf]
        %v505 = vld [vmem:[%s376 + $0x18] sm:$0xf]
        %v506 = vld [vmem:[%s376 + $0x1c] sm:$0xf]
        %v507 = vld [vmem:[%s376 + $0x20] sm:$0xf]
        %v508 = vld [vmem:[%s376 + $0x24] sm:$0xf]
        %v509 = vld [vmem:[%s376 + $0x28] sm:$0xf]
        %v510 = vld [vmem:[%s376 + $0x2c] sm:$0xf]
        %v511 = vld [vmem:[%s376 + $0x30] sm:$0xf]
        %v512 = vld [vmem:[%s376 + $0x34] sm:$0xf]
        %v513 = vld [vmem:[%s376 + $0x38] sm:$0xf]
        %v514 = vld [vmem:[%s376 + $0x3c] sm:$0xf]
        %v515 = vld [vmem:[%s449] sm:$0x1]
        %v517 = vlaneseq
        %v518 = vshrl.u32 %v517, 7
        %v519 = vsub.s32 0, %v518
        %v520 = vrot.slane %v515, %v519
        %v538 = vunpack.c.l.b16 %v483
        %v539 = vunpack.c.l.b16 %v484
        %v540 = vunpack.c.l.b16 %v485
        %v541 = vunpack.c.l.b16 %v486
        %v542 = vunpack.c.l.b16 %v487
        %v543 = vunpack.c.l.b16 %v488
        %v544 = vunpack.c.l.b16 %v489
        %v545 = vunpack.c.l.b16 %v490
        %v546 = vunpack.c.l.b16 %v491
        %v547 = vunpack.c.l.b16 %v492
        %v548 = vunpack.c.l.b16 %v493
        %v549 = vunpack.c.l.b16 %v494
        %v550 = vunpack.c.l.b16 %v495
        %v551 = vunpack.c.l.b16 %v496
        %v552 = vunpack.c.l.b16 %v497
        %v553 = vunpack.c.l.b16 %v498
        %v554 = vpack.c.b16 %v539, %v538
        %v555 = vpack.c.b16 %v541, %v540
        %v556 = vpack.c.b16 %v543, %v542
        %v557 = vpack.c.b16 %v545, %v544
        %v558 = vpack.c.b16 %v547, %v546
        %v559 = vpack.c.b16 %v549, %v548
        %v560 = vpack.c.b16 %v551, %v550
        %v561 = vpack.c.b16 %v553, %v552
        %v586 = vunpack.c.l.b16 %v499
        %v587 = vunpack.c.l.b16 %v500
        %v588 = vunpack.c.l.b16 %v501
        %v589 = vunpack.c.l.b16 %v502
        %v590 = vunpack.c.l.b16 %v503
        %v591 = vunpack.c.l.b16 %v504
        %v592 = vunpack.c.l.b16 %v505
        %v593 = vunpack.c.l.b16 %v506
        %v594 = vunpack.c.l.b16 %v507
        %v595 = vunpack.c.l.b16 %v508
        %v596 = vunpack.c.l.b16 %v509
        %v597 = vunpack.c.l.b16 %v510
        %v598 = vunpack.c.l.b16 %v511
        %v599 = vunpack.c.l.b16 %v512
        %v600 = vunpack.c.l.b16 %v513
        %v601 = vunpack.c.l.b16 %v514
        %v602 = vpack.c.b16 %v587, %v586
        %v603 = vpack.c.b16 %v589, %v588
        %v604 = vpack.c.b16 %v591, %v590
        %v605 = vpack.c.b16 %v593, %v592
        %v606 = vpack.c.b16 %v595, %v594
        %v607 = vpack.c.b16 %v597, %v596
        %v608 = vpack.c.b16 %v599, %v598
        %v609 = vpack.c.b16 %v601, %v600
        %618 = vmatprep.subr.bf16.mxu0 0
        %619 = vmatpush1.bf16.msra.mxu0 %v602
        %620 = vmatprep.subr.bf16.mxu0 0
        %621 = vmatpush1.bf16.msra.mxu0 %v603
        %622 = vmatprep.subr.bf16.mxu0 0
        %623 = vmatpush1.bf16.msra.mxu0 %v604
        %624 = vmatprep.subr.bf16.mxu0 0
        %625 = vmatpush1.bf16.msra.mxu0 %v605
        %626 = vmatprep.subr.bf16.mxu0 0
        %627 = vmatpush1.bf16.msra.mxu0 %v606
        %628 = vmatprep.subr.bf16.mxu0 0
        %629 = vmatpush1.bf16.msra.mxu0 %v607
        %630 = vmatprep.subr.bf16.mxu0 0
        %631 = vmatpush1.bf16.msra.mxu0 %v608
        %632 = vmatprep.subr.bf16.mxu0 0
        %633 = vmatpush1.bf16.msra.mxu0 %v609
        %634 = vmatprep.subr.bf16.mxu0 0
        %635 = vmatpush1.bf16.msra.mxu0 0
        %636 = vmatprep.subr.bf16.mxu0 0
        %637 = vmatpush1.bf16.msra.mxu0 0
        %638 = vmatprep.subr.bf16.mxu0 0
        %639 = vmatpush1.bf16.msra.mxu0 0
        %640 = vmatprep.subr.bf16.mxu0 0
        %641 = vmatpush1.bf16.msra.mxu0 0
        %642 = vmatprep.subr.bf16.mxu0 0
        %643 = vmatpush1.bf16.msra.mxu0 0
        %644 = vmatprep.subr.bf16.mxu0 0
        %645 = vmatpush1.bf16.msra.mxu0 0
        %646 = vmatprep.subr.bf16.mxu0 0
        %647 = vmatpush1.bf16.msra.mxu0 0
        %648 = vmatprep.subr.bf16.mxu0 0
        %649 = vmatpush1.bf16.msra.mxu0 0
        %650 = vmatprep.mubr.bf16.mxu0 0
        %651 = vmatmul.mubr.bf16.gmra.mrb[0].mxu0 %v554
        %v652 = vpop.f32.mrb[0].mxu0
        %v653 = vadd.f32 %v520, %v652
        %v654 = vpop.f32.mrb[0].mxu0
        %v655 = vpop.f32.mrb[0].mxu0
        %v656 = vadd.f32 %v520, %v655
        %v657 = vpop.f32.mrb[0].mxu0
        %658 = vmatprep.mubr.bf16.mxu0 0
        %659 = vmatmul.mubr.bf16.gmra.mrb[0].mxu0 %v555
        %v660 = vpop.f32.mrb[0].mxu0
        %v661 = vadd.f32 %v520, %v660
        %v662 = vpop.f32.mrb[0].mxu0
        %v663 = vpop.f32.mrb[0].mxu0
        %v664 = vadd.f32 %v520, %v663
        %v665 = vpop.f32.mrb[0].mxu0
        %666 = vmatprep.mubr.bf16.mxu0 0
        %667 = vmatmul.mubr.bf16.gmra.mrb[0].mxu0 %v556
        %v668 = vpop.f32.mrb[0].mxu0
        %v669 = vadd.f32 %v520, %v668
        %v670 = vpop.f32.mrb[0].mxu0
        %v671 = vpop.f32.mrb[0].mxu0
        %v672 = vadd.f32 %v520, %v671
        %v673 = vpop.f32.mrb[0].mxu0
        %674 = vmatprep.mubr.bf16.mxu0 0
        %675 = vmatmul.mubr.bf16.gmra.mrb[0].mxu0 %v557
        %v676 = vpop.f32.mrb[0].mxu0
        %v677 = vadd.f32 %v520, %v676
        %v678 = vpop.f32.mrb[0].mxu0
        %v679 = vpop.f32.mrb[0].mxu0
        %v680 = vadd.f32 %v520, %v679
        %v681 = vpop.f32.mrb[0].mxu0
        %682 = vmatprep.mubr.bf16.mxu0 0
        %683 = vmatmul.mubr.bf16.gmra.mrb[0].mxu0 %v558
        %v684 = vpop.f32.mrb[0].mxu0
        %v685 = vadd.f32 %v520, %v684
        %v686 = vpop.f32.mrb[0].mxu0
        %v687 = vpop.f32.mrb[0].mxu0
        %v688 = vadd.f32 %v520, %v687
        %v689 = vpop.f32.mrb[0].mxu0
        %690 = vmatprep.mubr.bf16.mxu0 0
        %691 = vmatmul.mubr.bf16.gmra.mrb[0].mxu0 %v559
        %v692 = vpop.f32.mrb[0].mxu0
        %v693 = vadd.f32 %v520, %v692
        %v694 = vpop.f32.mrb[0].mxu0
        %v695 = vpop.f32.mrb[0].mxu0
        %v696 = vadd.f32 %v520, %v695
        %v697 = vpop.f32.mrb[0].mxu0
        %698 = vmatprep.mubr.bf16.mxu0 0
        %699 = vmatmul.mubr.bf16.gmra.mrb[0].mxu0 %v560
        %v700 = vpop.f32.mrb[0].mxu0
        %v701 = vadd.f32 %v520, %v700
        %v702 = vpop.f32.mrb[0].mxu0
        %v703 = vpop.f32.mrb[0].mxu0
        %v704 = vadd.f32 %v520, %v703
        %v705 = vpop.f32.mrb[0].mxu0
        %706 = vmatprep.mubr.bf16.mxu0 0
        %707 = vmatmul.mubr.bf16.gmra.mrb[0].mxu0 %v561
        %v708 = vpop.f32.mrb[0].mxu0
        %v709 = vadd.f32 %v520, %v708
        %v710 = vpop.f32.mrb[0].mxu0
        %v711 = vpop.f32.mrb[0].mxu0
        %v712 = vadd.f32 %v520, %v711
        %v713 = vpop.f32.mrb[0].mxu0
        %714 = vdwg.mxu0
        %v715 = vld [vmem:[%s385] sm:$0xf]
        %v716 = vld [vmem:[%s385 + $0x4] sm:$0xf]
        %v717 = vld [vmem:[%s385 + $0x8] sm:$0xf]
        %v718 = vld [vmem:[%s385 + $0xc] sm:$0xf]
        %v719 = vld [vmem:[%s385 + $0x10] sm:$0xf]
        %v720 = vld [vmem:[%s385 + $0x14] sm:$0xf]
        %v721 = vld [vmem:[%s385 + $0x18] sm:$0xf]
        %v722 = vld [vmem:[%s385 + $0x1c] sm:$0xf]
        %v723 = vld [vmem:[%s385 + $0x20] sm:$0xf]
        %v724 = vld [vmem:[%s385 + $0x24] sm:$0xf]
        %v725 = vld [vmem:[%s385 + $0x28] sm:$0xf]
        %v726 = vld [vmem:[%s385 + $0x2c] sm:$0xf]
        %v727 = vld [vmem:[%s385 + $0x30] sm:$0xf]
        %v728 = vld [vmem:[%s385 + $0x34] sm:$0xf]
        %v729 = vld [vmem:[%s385 + $0x38] sm:$0xf]
        %v730 = vld [vmem:[%s385 + $0x3c] sm:$0xf]
        %v731 = vld [vmem:[%s452] sm:$0x1]
        %v733 = vlaneseq
        %v734 = vshrl.u32 %v733, 7
        %v735 = vsub.s32 0, %v734
        %v736 = vrot.slane %v731, %v735
        %v754 = vunpack.c.l.b16 %v715
        %v755 = vunpack.c.l.b16 %v716
        %v756 = vunpack.c.l.b16 %v717
        %v757 = vunpack.c.l.b16 %v718
        %v758 = vunpack.c.l.b16 %v719
        %v759 = vunpack.c.l.b16 %v720
        %v760 = vunpack.c.l.b16 %v721
        %v761 = vunpack.c.l.b16 %v722
        %v762 = vunpack.c.l.b16 %v723
        %v763 = vunpack.c.l.b16 %v724
        %v764 = vunpack.c.l.b16 %v725
        %v765 = vunpack.c.l.b16 %v726
        %v766 = vunpack.c.l.b16 %v727
        %v767 = vunpack.c.l.b16 %v728
        %v768 = vunpack.c.l.b16 %v729
        %v769 = vunpack.c.l.b16 %v730
        %v770 = vpack.c.b16 %v755, %v754
        %v771 = vpack.c.b16 %v757, %v756
        %v772 = vpack.c.b16 %v759, %v758
        %v773 = vpack.c.b16 %v761, %v760
        %v774 = vpack.c.b16 %v763, %v762
        %v775 = vpack.c.b16 %v765, %v764
        %v776 = vpack.c.b16 %v767, %v766
        %v777 = vpack.c.b16 %v769, %v768
        %786 = vmatprep.subr.bf16.mxu0 0
        %787 = vmatpush1.bf16.msra.mxu0 %v770
        %788 = vmatprep.subr.bf16.mxu0 0
        %789 = vmatpush1.bf16.msra.mxu0 %v771
        %790 = vmatprep.subr.bf16.mxu0 0
        %791 = vmatpush1.bf16.msra.mxu0 %v772
        %792 = vmatprep.subr.bf16.mxu0 0
        %793 = vmatpush1.bf16.msra.mxu0 %v773
        %794 = vmatprep.subr.bf16.mxu0 0
        %795 = vmatpush1.bf16.msra.mxu0 %v774
        %796 = vmatprep.subr.bf16.mxu0 0
        %797 = vmatpush1.bf16.msra.mxu0 %v775
        %798 = vmatprep.subr.bf16.mxu0 0
        %799 = vmatpush1.bf16.msra.mxu0 %v776
        %800 = vmatprep.subr.bf16.mxu0 0
        %801 = vmatpush1.bf16.msra.mxu0 %v777
        %802 = vmatprep.subr.bf16.mxu0 0
        %803 = vmatpush1.bf16.msra.mxu0 0
        %804 = vmatprep.subr.bf16.mxu0 0
        %805 = vmatpush1.bf16.msra.mxu0 0
        %806 = vmatprep.subr.bf16.mxu0 0
        %807 = vmatpush1.bf16.msra.mxu0 0
        %808 = vmatprep.subr.bf16.mxu0 0
        %809 = vmatpush1.bf16.msra.mxu0 0
        %810 = vmatprep.subr.bf16.mxu0 0
        %811 = vmatpush1.bf16.msra.mxu0 0
        %812 = vmatprep.subr.bf16.mxu0 0
        %813 = vmatpush1.bf16.msra.mxu0 0
        %814 = vmatprep.subr.bf16.mxu0 0
        %815 = vmatpush1.bf16.msra.mxu0 0
        %816 = vmatprep.subr.bf16.mxu0 0
        %817 = vmatpush1.bf16.msra.mxu0 0
        %818 = vmatprep.mubr.bf16.mxu0 0
        %819 = vmatmul.mubr.bf16.gmra.mrb[0].mxu0 %v554
        %v820 = vpop.f32.mrb[0].mxu0
        %v821 = vadd.f32 %v736, %v820
        %v822 = vpop.f32.mrb[0].mxu0
        %v823 = vpop.f32.mrb[0].mxu0
        %v824 = vadd.f32 %v736, %v823
        %v825 = vpop.f32.mrb[0].mxu0
        %826 = vmatprep.mubr.bf16.mxu0 0
        %827 = vmatmul.mubr.bf16.gmra.mrb[0].mxu0 %v555
        %v828 = vpop.f32.mrb[0].mxu0
        %v829 = vadd.f32 %v736, %v828
        %v830 = vpop.f32.mrb[0].mxu0
        %v831 = vpop.f32.mrb[0].mxu0
        %v832 = vadd.f32 %v736, %v831
        %v833 = vpop.f32.mrb[0].mxu0
        %834 = vmatprep.mubr.bf16.mxu0 0
        %835 = vmatmul.mubr.bf16.gmra.mrb[0].mxu0 %v556
        %v836 = vpop.f32.mrb[0].mxu0
        %v837 = vadd.f32 %v736, %v836
        %v838 = vpop.f32.mrb[0].mxu0
        %v839 = vpop.f32.mrb[0].mxu0
        %v840 = vadd.f32 %v736, %v839
        %v841 = vpop.f32.mrb[0].mxu0
        %842 = vmatprep.mubr.bf16.mxu0 0
        %843 = vmatmul.mubr.bf16.gmra.mrb[0].mxu0 %v557
        %v844 = vpop.f32.mrb[0].mxu0
        %v845 = vadd.f32 %v736, %v844
        %v846 = vpop.f32.mrb[0].mxu0
        %v847 = vpop.f32.mrb[0].mxu0
        %v848 = vadd.f32 %v736, %v847
        %v849 = vpop.f32.mrb[0].mxu0
        %850 = vmatprep.mubr.bf16.mxu0 0
        %851 = vmatmul.mubr.bf16.gmra.mrb[0].mxu0 %v558
        %v852 = vpop.f32.mrb[0].mxu0
        %v853 = vadd.f32 %v736, %v852
        %v854 = vpop.f32.mrb[0].mxu0
        %v855 = vpop.f32.mrb[0].mxu0
        %v856 = vadd.f32 %v736, %v855
        %v857 = vpop.f32.mrb[0].mxu0
        %858 = vmatprep.mubr.bf16.mxu0 0
        %859 = vmatmul.mubr.bf16.gmra.mrb[0].mxu0 %v559
        %v860 = vpop.f32.mrb[0].mxu0
        %v861 = vadd.f32 %v736, %v860
        %v862 = vpop.f32.mrb[0].mxu0
        %v863 = vpop.f32.mrb[0].mxu0
        %v864 = vadd.f32 %v736, %v863
        %v865 = vpop.f32.mrb[0].mxu0
        %866 = vmatprep.mubr.bf16.mxu0 0
        %867 = vmatmul.mubr.bf16.gmra.mrb[0].mxu0 %v560
        %v868 = vpop.f32.mrb[0].mxu0
        %v869 = vadd.f32 %v736, %v868
        %v870 = vpop.f32.mrb[0].mxu0
        %v871 = vpop.f32.mrb[0].mxu0
        %v872 = vadd.f32 %v736, %v871
        %v873 = vpop.f32.mrb[0].mxu0
        %874 = vmatprep.mubr.bf16.mxu0 0
        %875 = vmatmul.mubr.bf16.gmra.mrb[0].mxu0 %v561
        %v876 = vpop.f32.mrb[0].mxu0
        %v877 = vadd.f32 %v736, %v876
        %v878 = vpop.f32.mrb[0].mxu0
        %v879 = vpop.f32.mrb[0].mxu0
        %v880 = vadd.f32 %v736, %v879
        %v881 = vpop.f32.mrb[0].mxu0
        %882 = vdwg.mxu0
        %v883 = vxor.u32 %v653, 2147483648
        %v884 = vxor.u32 %v656, 2147483648
        %v885 = vxor.u32 %v661, 2147483648
        %v886 = vxor.u32 %v664, 2147483648
        %v887 = vxor.u32 %v669, 2147483648
        %v888 = vxor.u32 %v672, 2147483648
        %v889 = vxor.u32 %v677, 2147483648
        %v890 = vxor.u32 %v680, 2147483648
        %v891 = vxor.u32 %v685, 2147483648
        %v892 = vxor.u32 %v688, 2147483648
        %v893 = vxor.u32 %v693, 2147483648
        %v894 = vxor.u32 %v696, 2147483648
        %v895 = vxor.u32 %v701, 2147483648
        %v896 = vxor.u32 %v704, 2147483648
        %v897 = vxor.u32 %v709, 2147483648
        %v898 = vxor.u32 %v712, 2147483648
        %v899 = vmul.f32 %v883, 1.442695
        %v900 = vpow.pop %v899
        %v901 = vmul.f32 %v884, 1.442695
        %v902 = vpow.pop %v901
        %v903 = vmul.f32 %v885, 1.442695
        %v904 = vpow.pop %v903
        %v905 = vmul.f32 %v886, 1.442695
        %v906 = vpow.pop %v905
        %v907 = vmul.f32 %v887, 1.442695
        %v908 = vpow.pop %v907
        %v909 = vmul.f32 %v888, 1.442695
        %v910 = vpow.pop %v909
        %v911 = vmul.f32 %v889, 1.442695
        %v912 = vpow.pop %v911
        %v913 = vmul.f32 %v890, 1.442695
        %v914 = vpow.pop %v913
        %v915 = vmul.f32 %v891, 1.442695
        %v916 = vpow.pop %v915
        %v917 = vmul.f32 %v892, 1.442695
        %v918 = vpow.pop %v917
        %v919 = vmul.f32 %v893, 1.442695
        %v920 = vpow.pop %v919
        %v921 = vmul.f32 %v894, 1.442695
        %v922 = vpow.pop %v921
        %v923 = vmul.f32 %v895, 1.442695
        %v924 = vpow.pop %v923
        %v925 = vmul.f32 %v896, 1.442695
        %v926 = vpow.pop %v925
        %v927 = vmul.f32 %v897, 1.442695
        %v928 = vpow.pop %v927
        %v929 = vmul.f32 %v898, 1.442695
        %v930 = vpow.pop %v929
        %v931 = vadd.f32 %v900, 1.0
        %v932 = vadd.f32 %v902, 1.0
        %v933 = vadd.f32 %v904, 1.0
        %v934 = vadd.f32 %v906, 1.0
        %v935 = vadd.f32 %v908, 1.0
        %v936 = vadd.f32 %v910, 1.0
        %v937 = vadd.f32 %v912, 1.0
        %v938 = vadd.f32 %v914, 1.0
        %v939 = vadd.f32 %v916, 1.0
        %v940 = vadd.f32 %v918, 1.0
        %v941 = vadd.f32 %v920, 1.0
        %v942 = vadd.f32 %v922, 1.0
        %v943 = vadd.f32 %v924, 1.0
        %v944 = vadd.f32 %v926, 1.0
        %v945 = vadd.f32 %v928, 1.0
        %v946 = vadd.f32 %v930, 1.0
        %v947 = vrcp.pop %v931
        %v948 = vmul.f32 1.0, %v947
        %v949 = vrcp.pop %v932
        %v950 = vmul.f32 1.0, %v949
        %v951 = vrcp.pop %v933
        %v952 = vmul.f32 1.0, %v951
        %v953 = vrcp.pop %v934
        %v954 = vmul.f32 1.0, %v953
        %v955 = vrcp.pop %v935
        %v956 = vmul.f32 1.0, %v955
        %v957 = vrcp.pop %v936
        %v958 = vmul.f32 1.0, %v957
        %v959 = vrcp.pop %v937
        %v960 = vmul.f32 1.0, %v959
        %v961 = vrcp.pop %v938
        %v962 = vmul.f32 1.0, %v961
        %v963 = vrcp.pop %v939
        %v964 = vmul.f32 1.0, %v963
        %v965 = vrcp.pop %v940
        %v966 = vmul.f32 1.0, %v965
        %v967 = vrcp.pop %v941
        %v968 = vmul.f32 1.0, %v967
        %v969 = vrcp.pop %v942
        %v970 = vmul.f32 1.0, %v969
        %v971 = vrcp.pop %v943
        %v972 = vmul.f32 1.0, %v971
        %v973 = vrcp.pop %v944
        %v974 = vmul.f32 1.0, %v973
        %v975 = vrcp.pop %v945
        %v976 = vmul.f32 1.0, %v975
        %v977 = vrcp.pop %v946
        %v978 = vmul.f32 1.0, %v977
        %v979 = vmul.f32 %v653, %v948
        %v980 = vmul.f32 %v656, %v950
        %v981 = vmul.f32 %v661, %v952
        %v982 = vmul.f32 %v664, %v954
        %v983 = vmul.f32 %v669, %v956
        %v984 = vmul.f32 %v672, %v958
        %v985 = vmul.f32 %v677, %v960
        %v986 = vmul.f32 %v680, %v962
        %v987 = vmul.f32 %v685, %v964
        %v988 = vmul.f32 %v688, %v966
        %v989 = vmul.f32 %v693, %v968
        %v990 = vmul.f32 %v696, %v970
        %v991 = vmul.f32 %v701, %v972
        %v992 = vmul.f32 %v704, %v974
        %v993 = vmul.f32 %v709, %v976
        %v994 = vmul.f32 %v712, %v978
        %v995 = vmul.f32 %v979, %v821
        %v996 = vmul.f32 %v980, %v824
        %v997 = vmul.f32 %v981, %v829
        %v998 = vmul.f32 %v982, %v832
        %v999 = vmul.f32 %v983, %v837
        %v1000 = vmul.f32 %v984, %v840
        %v1001 = vmul.f32 %v985, %v845
        %v1002 = vmul.f32 %v986, %v848
        %v1003 = vmul.f32 %v987, %v853
        %v1004 = vmul.f32 %v988, %v856
        %v1005 = vmul.f32 %v989, %v861
        %v1006 = vmul.f32 %v990, %v864
        %v1007 = vmul.f32 %v991, %v869
        %v1008 = vmul.f32 %v992, %v872
        %v1009 = vmul.f32 %v993, %v877
        %v1010 = vmul.f32 %v994, %v880
        %v1011 = vld [vmem:[#allocation2] sm:$0xff]
        %v1012 = vld [vmem:[#allocation2 + $0x8] sm:$0xff]
        %v1013 = vld [vmem:[#allocation2 + $0x10] sm:$0xff]
        %v1014 = vld [vmem:[#allocation2 + $0x18] sm:$0xff]
        %v1015 = vld [vmem:[#allocation2 + $0x20] sm:$0xff]
        %v1016 = vld [vmem:[#allocation2 + $0x28] sm:$0xff]
        %v1017 = vld [vmem:[#allocation2 + $0x30] sm:$0xff]
        %v1018 = vld [vmem:[#allocation2 + $0x38] sm:$0xff]
        %v1019 = vld [vmem:[#allocation2 + $0x40] sm:$0xff]
        %v1020 = vld [vmem:[#allocation2 + $0x48] sm:$0xff]
        %v1021 = vld [vmem:[#allocation2 + $0x50] sm:$0xff]
        %v1022 = vld [vmem:[#allocation2 + $0x58] sm:$0xff]
        %v1023 = vld [vmem:[#allocation2 + $0x60] sm:$0xff]
        %v1024 = vld [vmem:[#allocation2 + $0x68] sm:$0xff]
        %v1025 = vld [vmem:[#allocation2 + $0x70] sm:$0xff]
        %v1026 = vld [vmem:[#allocation2 + $0x78] sm:$0xff]
        %v1027 = vpack.c.bf16 %v996, %v995
        %v1028 = vpack.c.bf16 %v998, %v997
        %v1029 = vpack.c.bf16 %v1000, %v999
        %v1030 = vpack.c.bf16 %v1002, %v1001
        %v1031 = vpack.c.bf16 %v1004, %v1003
        %v1032 = vpack.c.bf16 %v1006, %v1005
        %v1033 = vpack.c.bf16 %v1008, %v1007
        %v1034 = vpack.c.bf16 %v1010, %v1009
        %v1035 = vld [vmem:[%s394] sm:$0xf]
        %v1036 = vld [vmem:[%s394 + $0x4] sm:$0xf]
        %v1037 = vld [vmem:[%s394 + $0x8] sm:$0xf]
        %v1038 = vld [vmem:[%s394 + $0xc] sm:$0xf]
        %v1039 = vld [vmem:[%s394 + $0x10] sm:$0xf]
        %v1040 = vld [vmem:[%s394 + $0x14] sm:$0xf]
        %v1041 = vld [vmem:[%s394 + $0x18] sm:$0xf]
        %v1042 = vld [vmem:[%s394 + $0x1c] sm:$0xf]
        %v1043 = vld [vmem:[%s394 + $0x20] sm:$0xf]
        %v1044 = vld [vmem:[%s394 + $0x24] sm:$0xf]
        %v1045 = vld [vmem:[%s394 + $0x28] sm:$0xf]
        %v1046 = vld [vmem:[%s394 + $0x2c] sm:$0xf]
        %v1047 = vld [vmem:[%s394 + $0x30] sm:$0xf]
        %v1048 = vld [vmem:[%s394 + $0x34] sm:$0xf]
        %v1049 = vld [vmem:[%s394 + $0x38] sm:$0xf]
        %v1050 = vld [vmem:[%s394 + $0x3c] sm:$0xf]
        %v1067 = vunpack.c.l.b16 %v1035
        %v1068 = vunpack.c.l.b16 %v1036
        %v1069 = vunpack.c.l.b16 %v1037
        %v1070 = vunpack.c.l.b16 %v1038
        %v1071 = vunpack.c.l.b16 %v1039
        %v1072 = vunpack.c.l.b16 %v1040
        %v1073 = vunpack.c.l.b16 %v1041
        %v1074 = vunpack.c.l.b16 %v1042
        %v1075 = vunpack.c.l.b16 %v1043
        %v1076 = vunpack.c.l.b16 %v1044
        %v1077 = vunpack.c.l.b16 %v1045
        %v1078 = vunpack.c.l.b16 %v1046
        %v1079 = vunpack.c.l.b16 %v1047
        %v1080 = vunpack.c.l.b16 %v1048
        %v1081 = vunpack.c.l.b16 %v1049
        %v1082 = vunpack.c.l.b16 %v1050
        %v1083 = vpack.c.b16 %v1068, %v1067
        %v1084 = vpack.c.b16 %v1070, %v1069
        %v1085 = vpack.c.b16 %v1072, %v1071
        %v1086 = vpack.c.b16 %v1074, %v1073
        %v1087 = vpack.c.b16 %v1076, %v1075
        %v1088 = vpack.c.b16 %v1078, %v1077
        %v1089 = vpack.c.b16 %v1080, %v1079
        %v1090 = vpack.c.b16 %v1082, %v1081
        %1099 = vmatprep.subr.bf16.mxu0 0
        %1100 = vmatpush1.bf16.msra.mxu0 %v1083
        %1101 = vmatprep.subr.bf16.mxu0 0
        %1102 = vmatpush1.bf16.msra.mxu0 %v1084
        %1103 = vmatprep.subr.bf16.mxu0 0
        %1104 = vmatpush1.bf16.msra.mxu0 %v1085
        %1105 = vmatprep.subr.bf16.mxu0 0
        %1106 = vmatpush1.bf16.msra.mxu0 %v1086
        %1107 = vmatprep.subr.bf16.mxu0 0
        %1108 = vmatpush1.bf16.msra.mxu0 %v1087
        %1109 = vmatprep.subr.bf16.mxu0 0
        %1110 = vmatpush1.bf16.msra.mxu0 %v1088
        %1111 = vmatprep.subr.bf16.mxu0 0
        %1112 = vmatpush1.bf16.msra.mxu0 %v1089
        %1113 = vmatprep.subr.bf16.mxu0 0
        %1114 = vmatpush1.bf16.msra.mxu0 %v1090
        %1115 = vmatprep.subr.bf16.mxu0 0
        %1116 = vmatpush1.bf16.msra.mxu0 0
        %1117 = vmatprep.subr.bf16.mxu0 0
        %1118 = vmatpush1.bf16.msra.mxu0 0
        %1119 = vmatprep.subr.bf16.mxu0 0
        %1120 = vmatpush1.bf16.msra.mxu0 0
        %1121 = vmatprep.subr.bf16.mxu0 0
        %1122 = vmatpush1.bf16.msra.mxu0 0
        %1123 = vmatprep.subr.bf16.mxu0 0
        %1124 = vmatpush1.bf16.msra.mxu0 0
        %1125 = vmatprep.subr.bf16.mxu0 0
        %1126 = vmatpush1.bf16.msra.mxu0 0
        %1127 = vmatprep.subr.bf16.mxu0 0
        %1128 = vmatpush1.bf16.msra.mxu0 0
        %1129 = vmatprep.subr.bf16.mxu0 0
        %1130 = vmatpush1.bf16.msra.mxu0 0
        %1131 = vmatprep.mubr.bf16.mxu0 0
        %1132 = vmatmul.mubr.bf16.gmra.mrb[0].mxu0 %v1027
        %v1133 = vpop.f32.mrb[0].mxu0
        %v1134 = vadd.f32 0.0, %v1133
        %v1135 = vpop.f32.mrb[0].mxu0
        %v1136 = vpop.f32.mrb[0].mxu0
        %v1137 = vadd.f32 0.0, %v1136
        %v1138 = vpop.f32.mrb[0].mxu0
        %1139 = vmatprep.mubr.bf16.mxu0 0
        %1140 = vmatmul.mubr.bf16.gmra.mrb[0].mxu0 %v1028
        %v1141 = vpop.f32.mrb[0].mxu0
        %v1142 = vadd.f32 0.0, %v1141
        %v1143 = vpop.f32.mrb[0].mxu0
        %v1144 = vpop.f32.mrb[0].mxu0
        %v1145 = vadd.f32 0.0, %v1144
        %v1146 = vpop.f32.mrb[0].mxu0
        %1147 = vmatprep.mubr.bf16.mxu0 0
        %1148 = vmatmul.mubr.bf16.gmra.mrb[0].mxu0 %v1029
        %v1149 = vpop.f32.mrb[0].mxu0
        %v1150 = vadd.f32 0.0, %v1149
        %v1151 = vpop.f32.mrb[0].mxu0
        %v1152 = vpop.f32.mrb[0].mxu0
        %v1153 = vadd.f32 0.0, %v1152
        %v1154 = vpop.f32.mrb[0].mxu0
        %1155 = vmatprep.mubr.bf16.mxu0 0
        %1156 = vmatmul.mubr.bf16.gmra.mrb[0].mxu0 %v1030
        %v1157 = vpop.f32.mrb[0].mxu0
        %v1158 = vadd.f32 0.0, %v1157
        %v1159 = vpop.f32.mrb[0].mxu0
        %v1160 = vpop.f32.mrb[0].mxu0
        %v1161 = vadd.f32 0.0, %v1160
        %v1162 = vpop.f32.mrb[0].mxu0
        %1163 = vmatprep.mubr.bf16.mxu0 0
        %1164 = vmatmul.mubr.bf16.gmra.mrb[0].mxu0 %v1031
        %v1165 = vpop.f32.mrb[0].mxu0
        %v1166 = vadd.f32 0.0, %v1165
        %v1167 = vpop.f32.mrb[0].mxu0
        %v1168 = vpop.f32.mrb[0].mxu0
        %v1169 = vadd.f32 0.0, %v1168
        %v1170 = vpop.f32.mrb[0].mxu0
        %1171 = vmatprep.mubr.bf16.mxu0 0
        %1172 = vmatmul.mubr.bf16.gmra.mrb[0].mxu0 %v1032
        %v1173 = vpop.f32.mrb[0].mxu0
        %v1174 = vadd.f32 0.0, %v1173
        %v1175 = vpop.f32.mrb[0].mxu0
        %v1176 = vpop.f32.mrb[0].mxu0
        %v1177 = vadd.f32 0.0, %v1176
        %v1178 = vpop.f32.mrb[0].mxu0
        %1179 = vmatprep.mubr.bf16.mxu0 0
        %1180 = vmatmul.mubr.bf16.gmra.mrb[0].mxu0 %v1033
        %v1181 = vpop.f32.mrb[0].mxu0
        %v1182 = vadd.f32 0.0, %v1181
        %v1183 = vpop.f32.mrb[0].mxu0
        %v1184 = vpop.f32.mrb[0].mxu0
        %v1185 = vadd.f32 0.0, %v1184
        %v1186 = vpop.f32.mrb[0].mxu0
        %1187 = vmatprep.mubr.bf16.mxu0 0
        %1188 = vmatmul.mubr.bf16.gmra.mrb[0].mxu0 %v1034
        %v1189 = vpop.f32.mrb[0].mxu0
        %v1190 = vadd.f32 0.0, %v1189
        %v1191 = vpop.f32.mrb[0].mxu0
        %v1192 = vpop.f32.mrb[0].mxu0
        %v1193 = vadd.f32 0.0, %v1192
        %v1194 = vpop.f32.mrb[0].mxu0
        %1195 = vdwg.mxu0
        %v1196 = vadd.f32 %v1011, %v1134
        %v1197 = vadd.f32 %v1012, %v1137
        %v1198 = vadd.f32 %v1013, %v1142
        %v1199 = vadd.f32 %v1014, %v1145
        %v1200 = vadd.f32 %v1015, %v1150
        %v1201 = vadd.f32 %v1016, %v1153
        %v1202 = vadd.f32 %v1017, %v1158
        %v1203 = vadd.f32 %v1018, %v1161
        %v1204 = vadd.f32 %v1019, %v1166
        %v1205 = vadd.f32 %v1020, %v1169
        %v1206 = vadd.f32 %v1021, %v1174
        %v1207 = vadd.f32 %v1022, %v1177
        %v1208 = vadd.f32 %v1023, %v1182
        %v1209 = vadd.f32 %v1024, %v1185
        %v1210 = vadd.f32 %v1025, %v1190
        %v1211 = vadd.f32 %v1026, %v1193
        %1212 = vst [vmem:[#allocation2] sm:$0xff] %v1196
        %1213 = vst [vmem:[#allocation2 + $0x8] sm:$0xff] %v1197
        %1214 = vst [vmem:[#allocation2 + $0x10] sm:$0xff] %v1198
        %1215 = vst [vmem:[#allocation2 + $0x18] sm:$0xff] %v1199
        %1216 = vst [vmem:[#allocation2 + $0x20] sm:$0xff] %v1200
        %1217 = vst [vmem:[#allocation2 + $0x28] sm:$0xff] %v1201
        %1218 = vst [vmem:[#allocation2 + $0x30] sm:$0xff] %v1202
        %1219 = vst [vmem:[#allocation2 + $0x38] sm:$0xff] %v1203
        %1220 = vst [vmem:[#allocation2 + $0x40] sm:$0xff] %v1204
        %1221 = vst [vmem:[#allocation2 + $0x48] sm:$0xff] %v1205
        %1222 = vst [vmem:[#allocation2 + $0x50] sm:$0xff] %v1206
        %1223 = vst [vmem:[#allocation2 + $0x58] sm:$0xff] %v1207
        %1224 = vst [vmem:[#allocation2 + $0x60] sm:$0xff] %v1208
        %1225 = vst [vmem:[#allocation2 + $0x68] sm:$0xff] %v1209
        %1226 = vst [vmem:[#allocation2 + $0x70] sm:$0xff] %v1210
        %1227 = vst [vmem:[#allocation2 + $0x78] sm:$0xff] %v1211
        %p1228 = scmp.eq.s32.totalorder %s35, 1
        // Predicated region
        $region69: #{tpu_custom_call.1} parent=47 // pred_check
          %p1229 = pneg %p1228
        $region70: #{tpu_custom_call.1} parent=47 // pred_check_branch
          %1231 = sbr.rel (%p1229) target = $region72
        $region71: #{tpu_custom_call.1} parent=47 // pred_region
          %v1232 = vld [vmem:[#allocation2] sm:$0xff]
          %v1233 = vld [vmem:[#allocation2 + $0x8] sm:$0xff]
          %v1234 = vld [vmem:[#allocation2 + $0x10] sm:$0xff]
          %v1235 = vld [vmem:[#allocation2 + $0x18] sm:$0xff]
          %v1236 = vld [vmem:[#allocation2 + $0x20] sm:$0xff]
          %v1237 = vld [vmem:[#allocation2 + $0x28] sm:$0xff]
          %v1238 = vld [vmem:[#allocation2 + $0x30] sm:$0xff]
          %v1239 = vld [vmem:[#allocation2 + $0x38] sm:$0xff]
          %v1240 = vld [vmem:[#allocation2 + $0x40] sm:$0xff]
          %v1241 = vld [vmem:[#allocation2 + $0x48] sm:$0xff]
          %v1242 = vld [vmem:[#allocation2 + $0x50] sm:$0xff]
          %v1243 = vld [vmem:[#allocation2 + $0x58] sm:$0xff]
          %v1244 = vld [vmem:[#allocation2 + $0x60] sm:$0xff]
          %v1245 = vld [vmem:[#allocation2 + $0x68] sm:$0xff]
          %v1246 = vld [vmem:[#allocation2 + $0x70] sm:$0xff]
          %v1247 = vld [vmem:[#allocation2 + $0x78] sm:$0xff]
          %1248 = vst [vmem:[%s445] sm:$0xff] %v1232
          %1249 = vst [vmem:[%s445 + $0x8] sm:$0xff] %v1233
          %1250 = vst [vmem:[%s445 + $0x10] sm:$0xff] %v1234
          %1251 = vst [vmem:[%s445 + $0x18] sm:$0xff] %v1235
          %1252 = vst [vmem:[%s445 + $0x20] sm:$0xff] %v1236
          %1253 = vst [vmem:[%s445 + $0x28] sm:$0xff] %v1237
          %1254 = vst [vmem:[%s445 + $0x30] sm:$0xff] %v1238
          %1255 = vst [vmem:[%s445 + $0x38] sm:$0xff] %v1239
          %1256 = vst [vmem:[%s445 + $0x40] sm:$0xff] %v1240
          %1257 = vst [vmem:[%s445 + $0x48] sm:$0xff] %v1241
          %1258 = vst [vmem:[%s445 + $0x50] sm:$0xff] %v1242
          %1259 = vst [vmem:[%s445 + $0x58] sm:$0xff] %v1243
          %1260 = vst [vmem:[%s445 + $0x60] sm:$0xff] %v1244
          %1261 = vst [vmem:[%s445 + $0x68] sm:$0xff] %v1245
          %1262 = vst [vmem:[%s445 + $0x70] sm:$0xff] %v1246
          %1263 = vst [vmem:[%s445 + $0x78] sm:$0xff] %v1247
        $region72: #{tpu_custom_call.1} parent=47 // pred_fallthru
          _
        %s1264 = sand.u32 %s227, 1
        %s1265 = scalar_lea.sflag [#allocation5], %s1264
        %s1266 = sand.u32 %s227, 1
        %s1267 = smul.addr %s1266, 128
        %s1268 = scalar_lea.vmem [#allocation11], %s1267
        // Predicated region
        $region73: #{tpu_custom_call.1} parent=47 // pred_check
          %p1269 = pneg %p237
        $region74: #{tpu_custom_call.1} parent=47 // pred_check_branch
          %1271 = sbr.rel (%p1269) target = $region76
        $region75: #{tpu_custom_call.1} parent=47 // pred_region
          %s1272 = smul.u32 16, %s34
          %s1274 = ssub.s32 2048, 2048
          %1275 = vsyncadd %s1265, %s1274
          %s1276 = smul.addr %s1272, 128
          %s1277 = scalar_lea.hbm %s7, %s1276
          %s1278 = sshll.u32 %s1268, 4
          %s1279 = int_to_ptr.vmem [resolvable:$true] %s1278
          %1284 = dma.vmem_to_hbm [thread:$0]  %s1279, 2048, %s1277, %s1265, 128, 128, 8
        $region76: #{tpu_custom_call.1} parent=47 // pred_fallthru
          _
      $region48: #{tpu_custom_call.1} parent=5 // pred_fallthru
        _
      %p1285 = scmp.le.s32.totalorder 2, %s25
      // Predicated region
      $region77: #{tpu_custom_call.1} parent=5 // pred_check
        %p1286 = pneg %p1285
      $region78: #{tpu_custom_call.1} parent=5 // pred_check_branch
        %1288 = sbr.rel (%p1286) target = $region80
      $region79: #{tpu_custom_call.1} parent=5 // pred_region
        %s1289 = ssub.s32 %s25, 2
        // Predicated region
        $region81: #{tpu_custom_call.1} parent=79 // pred_check
          %p1290 = pneg %p243
        $region82: #{tpu_custom_call.1} parent=79 // pred_check_branch
          %1292 = sbr.rel (%p1290) target = $region84
        $region83: #{tpu_custom_call.1} parent=79 // pred_region
          %s1293 = sand.u32 %s228, 1
          %s1294 = scalar_lea.sflag [#allocation5], %s1293
          %s1295 = sand.u32 %s228, 1
          %s1296 = smul.addr %s1295, 128
          %s1297 = scalar_lea.vmem [#allocation11], %s1296
          %1298 = dma.done %s1294, 2048
        $region84: #{tpu_custom_call.1} parent=79 // pred_fallthru
          _
      $region80: #{tpu_custom_call.1} parent=5 // pred_fallthru
        _
    $region6: #{tpu_custom_call.1} parent=1 // loop_footer
      %s29 = sadd.s32 1, %s25
    $region7: #{tpu_custom_call.1} parent=1 // loop_footer_branch
      %24 = sbr.rel target = $region3
    $region8: #{tpu_custom_call.1} parent=1 // loop_exit
      _
    %1299 = vsyncpa [#allocation4], 1
    %s1300 = scalar_lea.sflag [#allocation4], 1
    %1301 = vsyncpa %s1300, 1
    %1302 = vsyncpa [#allocation7], 1
    %s1303 = scalar_lea.sflag [#allocation7], 1
    %1304 = vsyncpa %s1303, 1
    %1305 = vsyncpa [#allocation10], 1
    %s1306 = scalar_lea.sflag [#allocation10], 1
    %1307 = vsyncpa %s1306, 1
    %1308 = vsyncpa [#allocation5], 1
    %s1309 = scalar_lea.sflag [#allocation5], 1
    %1310 = vsyncpa %s1309, 1

</llo_original>
